<compile_context>
chip_gen: v6e
topology: v6e:2x2x1
jax: 0.10.0
libtpu: 0.0.40
codegen_flags: <defaults>
</compile_context>

<pallas_src>
import jax
import jax.numpy as jnp
from jax.experimental import pallas as pl
from jax.experimental.pallas import tpu as pltpu


def _product_vector_kernel(d_ref, sel_ref, out_ref):
    # d_ref:   (TB, N1+N2)   concatenated [dists1 | dists2] rows
    # sel_ref: (N1+N2, TN)   0/1 selection-matrix slice (constant across batch)
    # out_ref: (TB, TN)      lane-dense output block
    # Every output column has exactly one 1.0 in the selection matrix, so the
    # single MXU matmul is an exact relayout-plus-add:
    #   out[b, j*N1 + i] = dists1[b, i] + dists2[b, j]
    out_ref[...] = jnp.dot(
        d_ref[...], sel_ref[...], preferred_element_type=jnp.float32
    ).astype(out_ref.dtype)


def _round_up(x, m):
    return (x + m - 1) // m * m


def _sublane_align(*dtypes):
    # Minimum sublane tile: 8 rows for 4-byte dtypes, 16 for 2-byte, 32 for 1-byte.
    return max(max(8, 32 // jnp.dtype(d).itemsize) for d in dtypes)


def _vmem_budgets():
    """Returns (vmem_limit_bytes, tiling_budget_bytes), generation-aware."""
    cap = 64 * 1024 * 1024                       # conservative fallback (v7x per-TC)
    try:
        cap = int(pltpu.get_tpu_info().vmem_capacity_bytes)
    except Exception:
        pass
    # ~3/4 of physical VMEM: 48 MiB on v7x, 96 MiB on v5e/v6e (128 MiB parts).
    limit = min(cap * 3 // 4, 96 * 1024 * 1024)
    return limit, limit - 4 * 1024 * 1024        # small headroom for the tiler


def _pick_tiles(B, K, NP_pad, in_itemsize, out_itemsize, align, budget,
                batch_tile, lane_tile):
    # Lane (output-column) tile: multiple of 128 so stores stay dense; bounded
    # so only a slice of the constant selection matrix is resident at large NP.
    if lane_tile is None:
        tn = min(NP_pad, 4096)
    else:
        tn = min(_round_up(int(lane_tile), 128), NP_pad)

    if batch_tile is not None:
        tb = min(int(batch_tile), B)
        assert tb == B or tb % align == 0, (
            f"batch_tile must be a multiple of {align} (or >= B)")
        return tb, tn

    # VMEM per grid step (everything double-buffered by BlockSpec):
    #   input: 2 * tb * rup(K,128) * in_b   sel: 2 * rup(K,8) * tn * in_b
    #   out:   2 * tb * tn * out_b
    fixed = 2 * _round_up(K, 8) * tn * in_itemsize
    per_row = 2 * (_round_up(K, 128) * in_itemsize + tn * out_itemsize)
    tb = max(align, (budget - fixed) // per_row)
    tb = min(tb, 8192)                 # multi-MiB output per step is plenty
    tb = (tb // align) * align
    if tb >= B:
        tb = B                         # full-extent batch block is always legal
    return tb, tn


def product_vector_forward(dists1, dists2, *, out_dtype=None,
                           batch_tile=None, lane_tile=None):
    """Cross-product (outer sum in log-space) of two distribution vectors.

    dists1: (B, N1), dists2: (B, N2)
    returns: (B, N1*N2) with out[b, j*N1 + i] = dists1[b, i] + dists2[b, j]
    """
    assert dists1.shape[0] == dists2.shape[0], "batch mismatch"
    B, N1 = dists1.shape
    _, N2 = dists2.shape
    K = N1 + N2
    NP = N1 * N2
    NP_pad = _round_up(NP, 128)        # lane-dense stores / dense write DMA

    compute_dtype = jnp.promote_types(dists1.dtype, dists2.dtype)
    if out_dtype is None:
        out_dtype = compute_dtype
    out_dtype = jnp.dtype(out_dtype)

    # Single concatenated input: one HBM->VMEM DMA per batch tile.
    d = jnp.concatenate(
        [dists1.astype(compute_dtype), dists2.astype(compute_dtype)], axis=1)

    # Fused one-hot selection matrix (built once by XLA outside the kernel):
    #   row r   (< N1): sel[r, k]    = 1 iff k %  N1 == r   (tile of dists1)
    #   row N1+j      : sel[N1+j, k] = 1 iff k // N1 == j   (repeat of dists2)
    # Padded columns (k >= NP) are all zero and get sliced off after the call.
    k = jnp.arange(NP_pad, dtype=jnp.int32)
    valid = k < NP
    tile_mat = (k[None, :] % N1 == jnp.arange(N1, dtype=jnp.int32)[:, None]) & valid[None, :]
    rep_mat = (k[None, :] // N1 == jnp.arange(N2, dtype=jnp.int32)[:, None]) & valid[None, :]
    sel = jnp.concatenate([tile_mat, rep_mat], axis=0).astype(compute_dtype)  # (K, NP_pad)
    # TODO(synk): a bf16 selection matrix (0/1 is exact) would halve its
    # footprint and cut MXU passes on v6e/v7x, but mixed f32xbf16 dot lowering
    # is not guaranteed, so it stays in compute_dtype for portability.

    in_itemsize = jnp.dtype(compute_dtype).itemsize
    out_itemsize = out_dtype.itemsize
    align = _sublane_align(compute_dtype, out_dtype)
    vmem_limit, budget = _vmem_budgets()
    tb, tn = _pick_tiles(B, K, NP_pad, in_itemsize, out_itemsize, align,
                         budget, batch_tile, lane_tile)

    grid = (pl.cdiv(B, tb), pl.cdiv(NP_pad, tn))
    # When B % tb != 0 the final batch block reads rows past B (garbage) whose
    # outputs are discarded by Pallas — harmless wasted work, not a bug.

    out = pl.pallas_call(
        _product_vector_kernel,
        out_shape=jax.ShapeDtypeStruct((B, NP_pad), out_dtype),
        grid_spec=pltpu.PrefetchScalarGridSpec(
            num_scalar_prefetch=0,
            grid=grid,
            in_specs=[
                pl.BlockSpec((tb, K), lambda b, n: (b, 0)),
                pl.BlockSpec((K, tn), lambda b, n: (0, n)),   # constant over batch
            ],
            out_specs=pl.BlockSpec((tb, tn), lambda b, n: (b, n)),
        ),
        compiler_params=pltpu.CompilerParams(
            # TODO(synk): on v7x, pltpu.CORE_PARALLEL (or pl.core_map over a
            # 2-TC mesh) on the batch axis would split the grid across both
            # TensorCores; plain "parallel" is kept here for portability.
            dimension_semantics=("parallel", "parallel"),
            vmem_limit_bytes=vmem_limit,
        ),
    )(d, sel)

    return out if NP_pad == NP else out[:, :NP]


def product_vector_reference(dists1, dists2):
    B, N1 = dists1.shape
    _, N2 = dists2.shape
    prod = dists1[:, None, :] + dists2[:, :, None]   # (B, N2, N1)
    return prod.reshape(B, N1 * N2)


if __name__ == "__main__":
    key = jax.random.PRNGKey(0)
    k1, k2, k3, k4 = jax.random.split(key, 4)
    B = 16

    # Case 1: NP is a multiple of 128; force a small batch tile so the demo
    # exercises a multi-step (pipelined) grid.
    N1, N2 = 8, 16
    d1 = jax.nn.log_softmax(jax.random.normal(k1, (B, N1), dtype=jnp.float32), axis=-1)
    d2 = jax.nn.log_softmax(jax.random.normal(k2, (B, N2), dtype=jnp.float32), axis=-1)
    out = jax.block_until_ready(product_vector_forward(d1, d2, batch_tile=8))
    ref = product_vector_reference(d1, d2)
    assert out.shape == (B, N1 * N2), out.shape
    assert out.dtype == d1.dtype, out.dtype
    err = float(jnp.max(jnp.abs(out - ref)))
    assert jnp.allclose(out, ref, rtol=1e-6, atol=1e-5), f"case1 mismatch, max_err={err}"

    # Case 2: NP not a multiple of 128 — exercises the lane-padding + slice path.
    N1b, N2b = 4, 6
    d1b = jax.nn.log_softmax(jax.random.normal(k3, (B, N1b), dtype=jnp.float32), axis=-1)
    d2b = jax.nn.log_softmax(jax.random.normal(k4, (B, N2b), dtype=jnp.float32), axis=-1)
    outb = jax.block_until_ready(product_vector_forward(d1b, d2b))
    refb = product_vector_reference(d1b, d2b)
    assert outb.shape == (B, N1b * N2b), outb.shape
    errb = float(jnp.max(jnp.abs(outb - refb)))
    assert jnp.allclose(outb, refb, rtol=1e-6, atol=1e-5), f"case2 mismatch, max_err={errb}"

    print("KERNEL_OK")
</pallas_src>

<mosaic_0001>
module attributes {stable_mosaic.version = 11 : i64} {
  func.func @_product_vector_kernel(%arg0: i32, %arg1: i32, %arg2: memref<8x24xf32, #tpu.memory_space<vmem>>, %arg3: memref<24x128xf32, #tpu.memory_space<vmem>>, %arg4: memref<8x128xf32, #tpu.memory_space<vmem>>) attributes {dimension_semantics = [#tpu.dimension_semantics<parallel>, #tpu.dimension_semantics<parallel>], iteration_bounds = array<i64: 2, 1>, scalar_prefetch = 0 : i64, scratch_operands = 0 : i64, tpu.core_type = #tpu.core_type<tc>, window_params = [{transform_indices = @transform_0, window_bounds = array<i64: 8, 24>}, {transform_indices = @transform_1, window_bounds = array<i64: 24, 128>}, {transform_indices = @transform_2, window_bounds = array<i64: 8, 128>}]} {
    %c0 = arith.constant 0 : index
    %c0_0 = arith.constant 0 : index
    %0 = vector.load %arg2[%c0, %c0_0] : memref<8x24xf32, #tpu.memory_space<vmem>>, vector<8x24xf32>
    %c0_1 = arith.constant 0 : index
    %c0_2 = arith.constant 0 : index
    %1 = vector.load %arg3[%c0_1, %c0_2] : memref<24x128xf32, #tpu.memory_space<vmem>>, vector<24x128xf32>
    %cst = arith.constant dense<0.000000e+00> : vector<8x128xf32>
    %2 = tpu.matmul %0, %1, %cst {dimension_numbers = #tpu.dot_dimension_numbers<[1], [0], [0], [1], [0, 0, 1, 1], [], []>} : vector<8x24xf32>, vector<24x128xf32>, vector<8x128xf32> -> vector<8x128xf32>
    %c0_3 = arith.constant 0 : index
    %c0_4 = arith.constant 0 : index
    %3 = vector.load %arg4[%c0_3, %c0_4] : memref<8x128xf32, #tpu.memory_space<vmem>>, vector<8x128xf32>
    tpu.vector_store %arg4[%c0_3, %c0_4], %2 {strides = array<i32>} : memref<8x128xf32, #tpu.memory_space<vmem>>, vector<8x128xf32>,
    return
  }
  func.func @transform_0(%arg0: i32, %arg1: i32) -> (i32, i32) {
    %c0_i32 = arith.constant 0 : i32
    %c0_i32_0 = arith.constant 0 : i32
    return %arg0, %c0_i32 : i32, i32
  }
  func.func @transform_1(%arg0: i32, %arg1: i32) -> (i32, i32) {
    %c0_i32 = arith.constant 0 : i32
    %c0_i32_0 = arith.constant 0 : i32
    return %c0_i32, %arg1 : i32, i32
  }
  func.func @transform_2(%arg0: i32, %arg1: i32) -> (i32, i32) {
    %c0_i32 = arith.constant 0 : i32
    return %arg0, %arg1 : i32, i32
  }
}

</mosaic_0001>

<llo_original>
// kernel: tpu_custom_call.1
$region0: #{tpu_custom_call.1}
  #allocation0 [shape = 'u32[]', space=smem, size = 0x4, offset = 0x4, fixed_abs, tag = 'smem constant byte address 0x4 - core index']
  #allocation1 [shape = 'u32[144,128]{1,0:T(1,128)}', space=vmem, size = 0x12000, scoped, tag = 'internal scratch']
  %s0 = inlined_call_operand.hbm [shape: f32[16,24], index: 0, kind: input, shape index: {}]
  %s1 = inlined_call_operand.hbm [shape: f32[24,128], index: 1, kind: input, shape index: {}]
  %s2 = inlined_call_operand.hbm [shape: f32[16,128], index: 2, kind: output, shape index: {}]
  %s3 = sld [smem:[#allocation0]]
  $region49: #{tpu_custom_call.1} parent=0
    _
  %s5 = ssub.s32 1, %s3
  %s6 = scalar_select 0, %s5, %s3
  $region1: #{tpu_custom_call.1} parent=0
    #allocation2 [shape = 'u8[8192]{0}', space=vmem, size = 0x2000, scoped, tag = 'input window, operand 0']
    #allocation3 [shape = 's32[2]{0}', space=sflag, size = 0x8, scoped, tag = 'scoped memory for tpu_custom_call.1']
    #allocation4 [shape = 's32[2]{0}', space=sflag, size = 0x8, scoped, tag = 'scoped memory for tpu_custom_call.1']
    #allocation5 [shape = 'u8[12288]{0}', space=vmem, size = 0x3000, scoped, tag = 'input window, operand 1, single buffered']
    #allocation6 [shape = 's32[1]{0}', space=sflag, size = 0x4, scoped, tag = 'scoped memory for tpu_custom_call.1']
    #allocation7 [shape = 'u8[8192]{0}', space=vmem, size = 0x2000, scoped, tag = 'output window, operand 0']
    %7 = vsyncpa [#allocation3], 0
    %s8 = scalar_lea.sflag [#allocation3], 1
    %9 = vsyncpa %s8, 0
    %10 = vsyncpa [#allocation6], 0
    %11 = vsyncpa [#allocation4], 0
    %s12 = scalar_lea.sflag [#allocation4], 1
    %13 = vsyncpa %s12, 0
    loop: start=0, step=1, limit=4
    $region2: #{tpu_custom_call.1} parent=1 // loop_pre_header
      _
    $region3: #{tpu_custom_call.1} parent=1 // loop_header
      %s15 = sphi 0, %s19
      %p16 = scmp.ge.s32.totalorder %s15, 4
      %s22 = sphi 0, %s34
      %s23 = sphi 0, %s30
      %s24 = sphi 0, %s22
      %s25 = sphi 0, %s23
      %s26 = sphi 0, %s24
      %s27 = sphi 0, %s25
      %s37 = sphi 0, %s39
      %s40 = sphi 0, %s37
      %s41 = sphi 0, %s40
      %s57 = sphi 0, %s41
      %s63 = sphi 0, %s65
      %s66 = sphi 0, %s63
      %s67 = sphi 0, %s66
      %s83 = sphi 0, %s67
      %s91 = sphi 0, %s93
      %s94 = sphi 0, %s91
      %s95 = sphi 0, %s94
      %s111 = sphi 0, %s95
    $region4: #{tpu_custom_call.1} parent=1 // loop_header_branch
      %18 = sbr.rel (%p16) target = $region8
    $region5: #{tpu_custom_call.1} parent=1 // loop_body
      %s20 = ssub.s32 %s15, 1
      %s21 = ssub.s32 %s15, 2
      %s28 = sadd.s32 1, %s23
      %p29 = scmp.ge.s32.totalorder %s28, 1
      %s30 = scalar_select %p29, 0, %s28
      %s31 = sadd.s32 1, %s22
      %s32 = scalar_select %p29, %s31, %s22
      %p33 = scmp.ge.s32.totalorder %s32, 2
      %s34 = scalar_select %p33, 0, %s32
      %s35 = ssub.s32 %s22, %s34
      %p36 = scmp.eq.s32.totalorder %s35, 0
      %s38 = sadd.s32 %s37, 1
      %s39 = scalar_select %p36, %s37, %s38
      %p42 = pneg %p36
      %p43 = scmp.eq.s32.totalorder %s15, 1
      %p44 = por %p42, %p43
      %p45 = scmp.ne.s32.totalorder %s37, %s40
      %p46 = scmp.eq.s32.totalorder %s15, 0
      %p47 = por %p45, %p46
      %p48 = scmp.ne.s32.totalorder %s37, %s40
      %p49 = scmp.eq.s32.totalorder %s20, 1
      %p50 = por %p48, %p49
      %p51 = scmp.ne.s32.totalorder %s40, %s41
      %p52 = scmp.eq.s32.totalorder %s20, 0
      %p53 = por %p51, %p52
      %p54 = scmp.ne.s32.totalorder %s40, %s41
      %p55 = scmp.eq.s32.totalorder %s21, 1
      %p56 = por %p54, %p55
      %p58 = scmp.ne.s32.totalorder %s41, %s57
      %p59 = scmp.eq.s32.totalorder %s21, 0
      %p60 = por %p58, %p59
      %s61 = ssub.s32 %s23, %s30
      %p62 = scmp.eq.s32.totalorder %s61, 0
      %s64 = sadd.s32 %s63, 1
      %s65 = scalar_select %p62, %s63, %s64
      %p68 = pneg %p62
      %p69 = scmp.eq.s32.totalorder %s15, 1
      %p70 = por %p68, %p69
      %p71 = scmp.ne.s32.totalorder %s63, %s66
      %p72 = scmp.eq.s32.totalorder %s15, 0
      %p73 = por %p71, %p72
      %p74 = scmp.ne.s32.totalorder %s63, %s66
      %p75 = scmp.eq.s32.totalorder %s20, 1
      %p76 = por %p74, %p75
      %p77 = scmp.ne.s32.totalorder %s66, %s67
      %p78 = scmp.eq.s32.totalorder %s20, 0
      %p79 = por %p77, %p78
      %p80 = scmp.ne.s32.totalorder %s66, %s67
      %p81 = scmp.eq.s32.totalorder %s21, 1
      %p82 = por %p80, %p81
      %p84 = scmp.ne.s32.totalorder %s67, %s83
      %p85 = scmp.eq.s32.totalorder %s21, 0
      %p86 = por %p84, %p85
      %s87 = ssub.s32 %s22, %s34
      %s88 = ssub.s32 %s23, %s30
      %s89 = sor.u32 %s87, %s88
      %p90 = scmp.eq.s32.totalorder %s89, 0
      %s92 = sadd.s32 %s91, 1
      %s93 = scalar_select %p90, %s91, %s92
      %p96 = pneg %p90
      %p97 = scmp.eq.s32.totalorder %s15, 1
      %p98 = por %p96, %p97
      %p99 = scmp.ne.s32.totalorder %s91, %s94
      %p100 = scmp.eq.s32.totalorder %s15, 0
      %p101 = por %p99, %p100
      %p102 = scmp.ne.s32.totalorder %s91, %s94
      %p103 = scmp.eq.s32.totalorder %s20, 1
      %p104 = por %p102, %p103
      %p105 = scmp.ne.s32.totalorder %s94, %s95
      %p106 = scmp.eq.s32.totalorder %s20, 0
      %p107 = por %p105, %p106
      %p108 = scmp.ne.s32.totalorder %s94, %s95
      %p109 = scmp.eq.s32.totalorder %s21, 1
      %p110 = por %p108, %p109
      %p112 = scmp.ne.s32.totalorder %s95, %s111
      %p113 = scmp.eq.s32.totalorder %s21, 0
      %p114 = por %p112, %p113
      %p115 = scmp.le.s32.totalorder 1, %s15
      %p116 = scmp.lt.s32.totalorder %s15, 3
      %p117 = pnand %p115, %p116
      %p118 = pneg %p117
      // Predicated region
      $region9: #{tpu_custom_call.1} parent=5 // pred_check
        _
      $region10: #{tpu_custom_call.1} parent=5 // pred_check_branch
        %120 = sbr.rel (%p117) target = $region12
      $region11: #{tpu_custom_call.1} parent=5 // pred_region
        %s121 = ssub.s32 %s15, 1
        // Predicated region
        $region13: #{tpu_custom_call.1} parent=11 // pred_check
          %p122 = pneg %p79
        $region14: #{tpu_custom_call.1} parent=11 // pred_check_branch
          %124 = sbr.rel (%p122) target = $region16
        $region15: #{tpu_custom_call.1} parent=11 // pred_region
          %s126 = ssub.s32 384, 384
          %127 = vsyncadd [#allocation6], %s126
          %s128 = smul.addr %s25, 128
          %s129 = scalar_lea.hbm %s1, %s128
          %s130 = sshll.u32 [#allocation5], 4
          %s131 = int_to_ptr.vmem [resolvable:$true] %s130
          %136 = dma.hbm_to_vmem [thread:$0]  %s129, 384, %s131, [#allocation6], 128, 128, 8
        $region16: #{tpu_custom_call.1} parent=11 // pred_fallthru
          _
      $region12: #{tpu_custom_call.1} parent=5 // pred_fallthru
        _
      %p137 = scmp.lt.s32.totalorder %s15, 2
      // Predicated region
      $region17: #{tpu_custom_call.1} parent=5 // pred_check
        %p138 = pneg %p137
      $region18: #{tpu_custom_call.1} parent=5 // pred_check_branch
        %140 = sbr.rel (%p138) target = $region20
      $region19: #{tpu_custom_call.1} parent=5 // pred_region
        // Predicated region
        $region21: #{tpu_custom_call.1} parent=19 // pred_check
          %p141 = pneg %p47
        $region22: #{tpu_custom_call.1} parent=19 // pred_check_branch
          %143 = sbr.rel (%p141) target = $region24
        $region23: #{tpu_custom_call.1} parent=19 // pred_region
          %s144 = sand.u32 %s37, 1
          %s145 = scalar_lea.sflag [#allocation3], %s144
          %s146 = sand.u32 %s37, 1
          %s147 = smul.addr %s146, 8
          %s148 = scalar_lea.vmem [#allocation2], %s147
          %s150 = ssub.s32 128, 128
          %151 = vsyncadd %s145, %s150
          %s152 = smul.addr %s22, 128
          %s153 = scalar_lea.hbm %s0, %s152
          %s155 = sshll.u32 %s148, 4
          %s156 = int_to_ptr.vmem [resolvable:$true] %s155
          %158 = dma.hbm_to_vmem [thread:$0]  %s153, 128, %s156, %s145
        $region24: #{tpu_custom_call.1} parent=19 // pred_fallthru
          _
      $region20: #{tpu_custom_call.1} parent=5 // pred_fallthru
        _
      %p159 = scmp.le.s32.totalorder 1, %s15
      %p160 = scmp.lt.s32.totalorder %s15, 3
      %p161 = pnand %p159, %p160
      %p162 = pneg %p161
      // Predicated region
      $region25: #{tpu_custom_call.1} parent=5 // pred_check
        _
      $region26: #{tpu_custom_call.1} parent=5 // pred_check_branch
        %164 = sbr.rel (%p161) target = $region28
      $region27: #{tpu_custom_call.1} parent=5 // pred_region
        %s165 = ssub.s32 %s15, 1
        %s166 = sand.u32 %s40, 1
        %s167 = scalar_lea.sflag [#allocation3], %s166
        %s168 = sand.u32 %s40, 1
        %s169 = smul.addr %s168, 8
        %s170 = scalar_lea.vmem [#allocation2], %s169
        // Predicated region
        $region29: #{tpu_custom_call.1} parent=27 // pred_check
          %p171 = pneg %p53
        $region30: #{tpu_custom_call.1} parent=27 // pred_check_branch
          %173 = sbr.rel (%p171) target = $region32
        $region31: #{tpu_custom_call.1} parent=27 // pred_region
          %174 = dma.done %s167, 128
        $region32: #{tpu_custom_call.1} parent=27 // pred_fallthru
          _
        // Predicated region
        $region33: #{tpu_custom_call.1} parent=27 // pred_check
          %p175 = pneg %p79
        $region34: #{tpu_custom_call.1} parent=27 // pred_check_branch
          %177 = sbr.rel (%p175) target = $region36
        $region35: #{tpu_custom_call.1} parent=27 // pred_region
          %178 = dma.done [#allocation6], 384
        $region36: #{tpu_custom_call.1} parent=27 // pred_fallthru
          _
        %s179 = sand.u32 %s40, 1
        %s180 = scalar_lea.sflag [#allocation3], %s179
        %s181 = sand.u32 %s40, 1
        %s182 = smul.addr %s181, 8
        %s183 = scalar_lea.vmem [#allocation2], %s182
        %p184 = pneg %p53
        %p185 = pneg %p50
        %p186 = pneg %p79
        %p187 = pneg %p76
        %p188 = pneg %p107
        %p189 = pneg %p104
        %s190 = sand.u32 %s94, 1
        %s191 = scalar_lea.sflag [#allocation4], %s190
        %s192 = sand.u32 %s94, 1
        %s193 = smul.addr %s192, 8
        %s194 = scalar_lea.vmem [#allocation7], %s193
        %v195 = vld [vmem:[%s170] sm:$0xff]
        %v196 = vld [vmem:[#allocation5] sm:$0xff]
        %v197 = vld [vmem:[#allocation5 + $0x8] sm:$0xff]
        %v198 = vld [vmem:[#allocation5 + $0x10] sm:$0xff]
        %vm199 = vcmask 195584
        %v201 = vsel %vm199, %v195, 0
        %203 = vmatprep.subr.mxu0 0.0
        %204 = vmatpush1.msra.mxu0 0.0
        %205 = vmatprep.subr.mxu0 0.0
        %206 = vmatpush1.msra.mxu0 0.0
        %207 = vmatprep.subr.mxu0 0.0
        %208 = vmatpush1.msra.mxu0 0.0
        %209 = vmatprep.subr.mxu0 0.0
        %210 = vmatpush1.msra.mxu0 0.0
        %211 = vmatprep.subr.mxu0 0.0
        %212 = vmatpush1.msra.mxu0 0.0
        %213 = vmatprep.subr.mxu0 0.0
        %214 = vmatpush1.msra.mxu0 0.0
        %215 = vmatprep.subr.mxu0 0.0
        %216 = vmatpush1.msra.mxu0 0.0
        %217 = vmatprep.subr.mxu0 0.0
        %218 = vmatpush1.msra.mxu0 0.0
        %219 = vmatprep.subr.mxu0 0.0
        %220 = vmatpush1.msra.mxu0 0.0
        %221 = vmatprep.subr.mxu0 0.0
        %222 = vmatpush1.msra.mxu0 0.0
        %223 = vmatprep.subr.mxu0 0.0
        %224 = vmatpush1.msra.mxu0 0.0
        %225 = vmatprep.subr.mxu0 0.0
        %226 = vmatpush1.msra.mxu0 0.0
        %227 = vmatprep.subr.mxu0 0.0
        %228 = vmatpush1.msra.mxu0 0.0
        %229 = vmatprep.subr.mxu0 0.0
        %230 = vmatpush1.msra.mxu0 %v198
        %231 = vmatprep.subr.mxu0 0.0
        %232 = vmatpush1.msra.mxu0 %v197
        %233 = vmatprep.subr.mxu0 0.0
        %234 = vmatpush1.msra.mxu0 %v196
        %235 = vmatprep.subr.mxu0 0.0
        %236 = vmatpush2.msra.mxu0 0.0
        %237 = vmatprep.subr.mxu0 0.0
        %238 = vmatpush2.msra.mxu0 0.0
        %239 = vmatprep.subr.mxu0 0.0
        %240 = vmatpush2.msra.mxu0 0.0
        %241 = vmatprep.subr.mxu0 0.0
        %242 = vmatpush2.msra.mxu0 0.0
        %243 = vmatprep.subr.mxu0 0.0
        %244 = vmatpush2.msra.mxu0 0.0
        %245 = vmatprep.subr.mxu0 0.0
        %246 = vmatpush2.msra.mxu0 0.0
        %247 = vmatprep.subr.mxu0 0.0
        %248 = vmatpush2.msra.mxu0 0.0
        %249 = vmatprep.subr.mxu0 0.0
        %250 = vmatpush2.msra.mxu0 0.0
        %251 = vmatprep.subr.mxu0 0.0
        %252 = vmatpush2.msra.mxu0 0.0
        %253 = vmatprep.subr.mxu0 0.0
        %254 = vmatpush2.msra.mxu0 0.0
        %255 = vmatprep.subr.mxu0 0.0
        %256 = vmatpush2.msra.mxu0 0.0
        %257 = vmatprep.subr.mxu0 0.0
        %258 = vmatpush2.msra.mxu0 0.0
        %259 = vmatprep.subr.mxu0 0.0
        %260 = vmatpush2.msra.mxu0 0.0
        %261 = vmatprep.subr.mxu0 0.0
        %262 = vmatpush2.msra.mxu0 0.0
        %263 = vmatprep.subr.mxu0 0.0
        %264 = vmatpush2.msra.mxu0 0.0
        %265 = vmatprep.subr.mxu0 0.0
        %266 = vmatpush2.msra.mxu0 0.0
        %267 = vmatprep.mubr.f32.mxu0 0.0
        %268 = vmatmul.mubr.f32.gmra.mxu0 %v201
        %v269 = vpop.f32.mrf.mxu0
        %v270 = vadd.f32 0.0, %v269
        %v271 = vpop.f32.mrf.mxu0
        %272 = vdwg.mxu0
        %273 = vst [vmem:[%s194] sm:$0xff] %v270
        %s274 = sand.u32 %s94, 1
        %s275 = scalar_lea.sflag [#allocation4], %s274
        %s276 = sand.u32 %s94, 1
        %s277 = smul.addr %s276, 8
        %s278 = scalar_lea.vmem [#allocation7], %s277
        // Predicated region
        $region37: #{tpu_custom_call.1} parent=27 // pred_check
          %p279 = pneg %p104
        $region38: #{tpu_custom_call.1} parent=27 // pred_check_branch
          %281 = sbr.rel (%p279) target = $region40
        $region39: #{tpu_custom_call.1} parent=27 // pred_region
          %s283 = ssub.s32 128, 128
          %284 = vsyncadd %s275, %s283
          %s285 = sadd.s32 %s25, %s24
          %s286 = smul.addr %s285, 128
          %s287 = scalar_lea.hbm %s2, %s286
          %s289 = sshll.u32 %s278, 4
          %s290 = int_to_ptr.vmem [resolvable:$true] %s289
          %292 = dma.vmem_to_hbm [thread:$0]  %s290, 128, %s287, %s275
        $region40: #{tpu_custom_call.1} parent=27 // pred_fallthru
          _
      $region28: #{tpu_custom_call.1} parent=5 // pred_fallthru
        _
      %p293 = scmp.le.s32.totalorder 2, %s15
      // Predicated region
      $region41: #{tpu_custom_call.1} parent=5 // pred_check
        %p294 = pneg %p293
      $region42: #{tpu_custom_call.1} parent=5 // pred_check_branch
        %296 = sbr.rel (%p294) target = $region44
      $region43: #{tpu_custom_call.1} parent=5 // pred_region
        %s297 = ssub.s32 %s15, 2
        // Predicated region
        $region45: #{tpu_custom_call.1} parent=43 // pred_check
          %p298 = pneg %p110
        $region46: #{tpu_custom_call.1} parent=43 // pred_check_branch
          %300 = sbr.rel (%p298) target = $region48
        $region47: #{tpu_custom_call.1} parent=43 // pred_region
          %s301 = sand.u32 %s95, 1
          %s302 = scalar_lea.sflag [#allocation4], %s301
          %s303 = sand.u32 %s95, 1
          %s304 = smul.addr %s303, 8
          %s305 = scalar_lea.vmem [#allocation7], %s304
          %306 = dma.done %s302, 128
        $region48: #{tpu_custom_call.1} parent=43 // pred_fallthru
          _
      $region44: #{tpu_custom_call.1} parent=5 // pred_fallthru
        _
    $region6: #{tpu_custom_call.1} parent=1 // loop_footer
      %s19 = sadd.s32 1, %s15
    $region7: #{tpu_custom_call.1} parent=1 // loop_footer_branch
      %14 = sbr.rel target = $region3
    $region8: #{tpu_custom_call.1} parent=1 // loop_exit
      _
    %307 = vsyncpa [#allocation3], 1
    %s308 = scalar_lea.sflag [#allocation3], 1
    %309 = vsyncpa %s308, 1
    %310 = vsyncpa [#allocation6], 1
    %311 = vsyncpa [#allocation4], 1
    %s312 = scalar_lea.sflag [#allocation4], 1
    %313 = vsyncpa %s312, 1

</llo_original>
